<compile_context>
chip_gen: v7x
topology: tpu7x:2x2x1
jax: 0.10.0
libtpu: 0.0.40
codegen_flags: <defaults>
</compile_context>

<pallas_src>
import functools

import jax
import jax.numpy as jnp
from jax.experimental import pallas as pl
from jax.experimental.pallas import tpu as pltpu

_LANE = 128


def _round_up(n, m):
    return ((n + m - 1) // m) * m


def _pad_to(a, target_shape, value=0.0):
    pads = [(0, t - s) for s, t in zip(a.shape, target_shape)]
    if all(p == (0, 0) for p in pads):
        return a
    return jnp.pad(a, pads, constant_values=value)


def _resident_spec(block_shape, index_map):
    """BlockSpec for an operand whose index_map is constant: single-buffered.

    The default pipeline double-buffers every operand even when its block never
    changes; Buffered(1) halves the resident VMEM held by x / w1 / wf.  Falls back
    to a plain BlockSpec on JAX versions without `pipeline_mode`.
    """
    if hasattr(pl, "Buffered"):
        try:
            return pl.BlockSpec(block_shape, index_map, pipeline_mode=pl.Buffered(1))
        except Exception:
            pass
    return pl.BlockSpec(block_shape, index_map)


def _vmem_budget_bytes():
    """Generation-aware VMEM budget: ~90% of physical capacity (64 MiB fallback)."""
    try:
        cap = int(pltpu.get_tpu_info().vmem_capacity_bytes)
    except Exception:
        cap = 64 << 20  # conservative (v7x-sized) fallback
    return (cap * 9) // 10


# ----------------------------------------------------------------------------- kernel

def mlp_kernel(*refs, n_valid_rows, n_rows, layers_in_block, has_skip, compute_dtype):
    if has_skip:
        (x_ref, w1_ref, p1_ref, ws_ref, ps_ref, wf_ref, bf_ref, out_ref, h_ref) = refs
    else:
        (x_ref, w1_ref, p1_ref, wf_ref, bf_ref, out_ref, h_ref) = refs
        ws_ref = ps_ref = None

    step = pl.program_id(0)
    last = pl.num_programs(0) - 1
    f32 = jnp.float32
    eps = f32(1e-5)

    # Row mask so zero-padded batch rows never contaminate the BN statistics.
    if n_valid_rows == n_rows:
        row_mask = None
        inv_n = f32(1.0 / n_rows)
    else:
        row_ids = jax.lax.broadcasted_iota(jnp.int32, (n_rows, 1), 0)
        row_mask = (row_ids < n_valid_rows).astype(f32)
        inv_n = f32(1.0 / n_valid_rows)

    def leaky_relu(h, slope=f32(0.01)):
        return jnp.where(h >= 0, h, slope * h)

    def batchnorm(h, gamma, beta):
        # Training-mode BatchNorm1d (biased variance) folded into scale/shift.
        # One-pass E[h^2]-E[h]^2 so the ragged-batch mask is applied only once.
        hm = h if row_mask is None else h * row_mask
        mean = jnp.sum(hm, axis=0, keepdims=True) * inv_n
        ex2 = jnp.sum(hm * hm, axis=0, keepdims=True) * inv_n
        var = jnp.maximum(ex2 - mean * mean, f32(0.0))
        scale = gamma * jax.lax.rsqrt(var + eps)          # rsqrt -> EUP slot
        shift = beta - mean * scale
        return h * scale + shift

    # ---- Linear_block (fc -> LeakyReLU -> dropout(identity) -> BN): first step only ----
    @pl.when(step == 0)
    def _():
        p1 = p1_ref[...]                                   # rows: [bias, gamma, beta]
        h = jnp.dot(x_ref[...], w1_ref[...], preferred_element_type=f32) + p1[0:1]
        h_ref[...] = batchnorm(leaky_relu(h), p1[1:2], p1[2:3])

    # ---- Linear_skip_block(s): `layers_in_block` layers per grid step ----
    if has_skip:
        h = h_ref[...]
        for i in range(layers_in_block):                   # static unroll
            p = ps_ref[i]                                  # (3, H): [bias, gamma, beta]
            z = jnp.dot(h.astype(compute_dtype), ws_ref[i],
                        preferred_element_type=f32) + p[0:1]
            z = leaky_relu(z)
            # dropout -> identity
            h = batchnorm(h + z, p[1:2], p[2:3])
        h_ref[...] = h

    # ---- final Linear: last step only ----
    @pl.when(step == last)
    def _():
        out_ref[...] = (
            jnp.dot(h_ref[...].astype(compute_dtype), wf_ref[...],
                    preferred_element_type=f32) + bf_ref[...]
        ).astype(out_ref.dtype)


# ----------------------------------------------------------------------------- wrapper

def mlp_pallas(x, params, n_skip_layers, *, compute_dtype=jnp.float32,
               force_streamed=False):
    """Fused MLP forward.

    compute_dtype:
      jnp.float32  -> exact parity with the PyTorch module (default).
      jnp.bfloat16 -> recommended for speed on v5e/v6e/v7x alike: halves the streamed
                      weight bytes (the binding resource at small batch); only the MXU
                      matmul operands are bf16, all VPU/BN math stays f32.
    force_streamed: debug switch to force the per-layer streamed (grid=(L,)) path.
    """
    (w1, b1, g1, be1, ws, bs, gs, bes, wf, bf) = params
    batch, n_input = x.shape
    n_hidden = w1.shape[1]
    n_output = wf.shape[1]

    cd = jnp.dtype(compute_dtype)
    f32 = jnp.float32
    wbytes = cd.itemsize

    # bf16 operands pack 16 rows per sublane tile; avoid partially packed tiles.
    sub = 16 if wbytes == 2 else 8
    B = _round_up(max(batch, sub), sub)
    Din = _round_up(n_input, _LANE)
    H = _round_up(n_hidden, _LANE)
    O = _round_up(n_output, _LANE)
    L = int(n_skip_layers)
    has_skip = L > 0

    # Lane/sublane zero-padding (gamma padded with 1).  Padded hidden columns stay
    # exactly 0 through every layer; padded batch rows are masked out of BN stats.
    # Per-layer small params packed as rows [bias, gamma, beta] -> fewer, bigger DMAs.
    x_p = _pad_to(x.astype(f32), (B, Din)).astype(cd)
    w1_p = _pad_to(w1, (Din, H)).astype(cd)
    p1_p = jnp.concatenate(
        [_pad_to(b1, (1, H)), _pad_to(g1, (1, H), 1.0), _pad_to(be1, (1, H))], axis=0)
    wf_p = _pad_to(wf, (H, O)).astype(cd)
    bf_p = _pad_to(bf, (1, O))
    if has_skip:
        ws_p = _pad_to(ws, (L, H, H)).astype(cd)
        ps_p = jnp.concatenate(
            [_pad_to(bs, (L, 1, H)), _pad_to(gs, (L, 1, H), 1.0),
             _pad_to(bes, (L, 1, H))], axis=1)             # (L, 3, H)

    # --- resident vs streamed decision, generation-aware VMEM budget ---
    budget = _vmem_budget_bytes()
    resident_core = (B * Din * wbytes + Din * H * wbytes + 8 * H * 4       # x, w1, p1
                     + H * O * wbytes + 8 * O * 4                          # wf, bf
                     + 2 * B * O * 4                                       # out block
                     + B * H * 4)                                          # h scratch
    ws_full_bytes = (L * H * H * wbytes + L * 8 * H * 4) if has_skip else 0
    if not has_skip:
        resident_mode = True
    elif force_streamed:
        resident_mode = False
    else:
        resident_mode = (resident_core + ws_full_bytes) <= budget // 3

    const2 = lambda l: (0, 0)
    const3 = lambda l: (0, 0, 0)
    per_layer = lambda l: (l, 0, 0)

    in_specs = [
        _resident_spec((B, Din), const2),     # x   (resident, single-buffered)
        _resident_spec((Din, H), const2),     # w1  (resident, single-buffered)
        _resident_spec((3, H), const2),       # b1/gamma1/beta1 packed
    ]
    inputs = [x_p, w1_p, p1_p]
    if has_skip:
        if resident_mode:
            grid = (1,)
            layers_in_block = L
            in_specs += [_resident_spec((L, H, H), const3),   # all skip weights resident
                         _resident_spec((L, 3, H), const3)]
        else:
            grid = (L,)
            layers_in_block = 1
            # Streamed HxH weights: keep the default double buffer (bandwidth-bound,
            # not latency-bound; deeper buffering would only burn VMEM).
            in_specs += [pl.BlockSpec((1, H, H), per_layer),
                         pl.BlockSpec((1, 3, H), per_layer)]
        inputs += [ws_p, ps_p]
    else:
        grid = (1,)
        layers_in_block = 0
    in_specs += [_resident_spec((H, O), const2),   # wf (resident, single-buffered)
                 _resident_spec((1, O), const2)]   # bf
    inputs += [wf_p, bf_p]
    out_specs = pl.BlockSpec((B, O), const2)

    # VMEM limit: actual resident footprint (+ streamed double buffer) + headroom,
    # capped at ~90% of this generation's physical VMEM (no hard 64 MiB clamp).
    if resident_mode:
        vmem_est = resident_core + ws_full_bytes
    else:
        vmem_est = resident_core + 2 * (H * H * wbytes + 8 * H * 4)
    vmem_limit = int(min(max(vmem_est + (4 << 20), 8 << 20), budget))
    # TODO(synk): if a double-buffered HxH weight block alone exceeds `budget` (huge H on
    # v7x's 64 MiB VMEM), tile the skip matmul over output features with a second grid
    # axis and a two-stage BN reduction; bf16 weights already push that limit out 2x.

    flops = (2 * B * Din * H + L * 2 * B * H * H + 2 * B * H * O
             + (1 + L) * B * H * 10)
    cost = pl.CostEstimate(
        flops=int(flops),
        transcendentals=int((1 + L) * H),
        bytes_accessed=int(sum(int(a.size) * a.dtype.itemsize for a in inputs)
                           + B * O * 4),
    )

    kernel = functools.partial(
        mlp_kernel,
        n_valid_rows=batch, n_rows=B, layers_in_block=layers_in_block,
        has_skip=has_skip, compute_dtype=cd)

    out_p = pl.pallas_call(
        kernel,
        out_shape=jax.ShapeDtypeStruct((B, O), jnp.float32),
        grid_spec=pltpu.PrefetchScalarGridSpec(
            num_scalar_prefetch=0,
            grid=grid,
            in_specs=in_specs,
            out_specs=out_specs,
            scratch_shapes=[pltpu.VMEM((B, H), jnp.float32)],  # persistent activation h
        ),
        compiler_params=pltpu.CompilerParams(
            dimension_semantics=("arbitrary",),   # layer axis carries h -> sequential
            vmem_limit_bytes=vmem_limit,
        ),
        cost_estimate=cost,
    )(*inputs)

    return out_p[:batch, :n_output]


# ----------------------------------------------------------------------------- reference

def _leaky_relu_ref(h, slope=0.01):
    return jnp.where(h >= 0, h, slope * h)


def _batchnorm_ref(h, gamma, beta, eps=1e-5):
    mean = jnp.mean(h, axis=0, keepdims=True)
    var = jnp.mean((h - mean) ** 2, axis=0, keepdims=True)
    return gamma * (h - mean) * jax.lax.rsqrt(var + eps) + beta


def mlp_reference(x, params, n_skip_layers):
    """Plain-JAX reference with identical (f32) semantics, for validation."""
    (w1, b1, g1, be1, ws, bs, gs, bes, wf, bf) = params
    h = _batchnorm_ref(_leaky_relu_ref(x @ w1 + b1), g1, be1)
    for i in range(n_skip_layers):
        z = _leaky_relu_ref(h @ ws[i] + bs[i])
        h = _batchnorm_ref(h + z, gs[i], bes[i])
    return h @ wf + bf


def init_params(key, n_input, n_hidden, n_output, n_skip_layers):
    """nn.Linear-style init (U(-1/sqrt(in), 1/sqrt(in))), BN gamma=1 / beta=0.
    Weights stored pre-transposed as (in, out)."""
    keys = jax.random.split(key, 3)

    def linear(k, n_in, n_out, extra_shape=()):
        kw, kb = jax.random.split(k)
        bound = 1.0 / jnp.sqrt(jnp.float32(n_in))
        w = jax.random.uniform(kw, extra_shape + (n_in, n_out),
                               minval=-bound, maxval=bound, dtype=jnp.float32)
        b = jax.random.uniform(kb, extra_shape + (1, n_out),
                               minval=-bound, maxval=bound, dtype=jnp.float32)
        return w, b

    w1, b1 = linear(keys[0], n_input, n_hidden)
    g1 = jnp.ones((1, n_hidden), jnp.float32)
    be1 = jnp.zeros((1, n_hidden), jnp.float32)

    ws, bs = linear(keys[1], n_hidden, n_hidden, extra_shape=(n_skip_layers,))
    gs = jnp.ones((n_skip_layers, 1, n_hidden), jnp.float32)
    bes = jnp.zeros((n_skip_layers, 1, n_hidden), jnp.float32)

    wf, bf = linear(keys[2], n_hidden, n_output)

    return (w1, b1, g1, be1, ws, bs, gs, bes, wf, bf)


if __name__ == "__main__":
    # Small shapes consistent with MLP(n_input_units, n_output_units, n_hidden_units, ...)
    batch = 8
    n_input = 16
    n_hidden = 32
    n_output = 8
    n_skip_layers = 2
    dropout_rate = 0.1  # unused: dropout is identity (deterministic forward)

    key = jax.random.PRNGKey(0)
    kx, kp = jax.random.split(key)
    x = jax.random.normal(kx, (batch, n_input), dtype=jnp.float32)
    params = init_params(kp, n_input, n_hidden, n_output, n_skip_layers)
    ref = mlp_reference(x, params, n_skip_layers)

    # 1) f32 resident mode: exact parity with the PyTorch-equivalent reference.
    out = jax.block_until_ready(mlp_pallas(x, params, n_skip_layers))
    assert out.shape == (batch, n_output), out.shape
    assert jnp.allclose(out, ref, atol=1e-4, rtol=1e-4), float(jnp.max(jnp.abs(out - ref)))

    # 2) Non-multiple-of-8 batch: exercises sublane padding + masked BN statistics.
    x_odd = jax.random.normal(kx, (5, n_input), dtype=jnp.float32)
    out_odd = jax.block_until_ready(mlp_pallas(x_odd, params, n_skip_layers))
    ref_odd = mlp_reference(x_odd, params, n_skip_layers)
    assert out_odd.shape == (5, n_output)
    assert jnp.allclose(out_odd, ref_odd, atol=1e-4, rtol=1e-4), \
        float(jnp.max(jnp.abs(out_odd - ref_odd)))

    # 3) Streamed (grid=(L,)) path with single-buffered residents, f32 parity.
    out_stream = jax.block_until_ready(
        mlp_pallas(x, params, n_skip_layers, force_streamed=True))
    assert out_stream.shape == (batch, n_output)
    assert jnp.allclose(out_stream, ref, atol=1e-4, rtol=1e-4), \
        float(jnp.max(jnp.abs(out_stream - ref)))

    # 4) Recommended bf16 matmul-operand / weight-streaming variant (all generations);
    #    bias/LeakyReLU/BN math stays f32, so only MXU rounding differs.
    out_bf16 = jax.block_until_ready(
        mlp_pallas(x, params, n_skip_layers, compute_dtype=jnp.bfloat16))
    assert out_bf16.shape == (batch, n_output)
    assert jnp.allclose(out_bf16, ref, atol=1e-1, rtol=1e-1), \
        float(jnp.max(jnp.abs(out_bf16 - ref)))

    print("KERNEL_OK")
</pallas_src>

<mosaic_0001>
module attributes {stable_mosaic.version = 11 : i64} {
  func.func @mlp_kernel(%arg0: i32, %arg1: memref<8x128xf32, #tpu.memory_space<vmem>>, %arg2: memref<128x128xf32, #tpu.memory_space<vmem>>, %arg3: memref<3x128xf32, #tpu.memory_space<vmem>>, %arg4: memref<2x128x128xf32, #tpu.memory_space<vmem>>, %arg5: memref<2x3x128xf32, #tpu.memory_space<vmem>>, %arg6: memref<128x128xf32, #tpu.memory_space<vmem>>, %arg7: memref<1x128xf32, #tpu.memory_space<vmem>>, %arg8: memref<8x128xf32, #tpu.memory_space<vmem>>, %arg9: memref<8x128xf32, #tpu.memory_space<vmem>>) attributes {dimension_semantics = [#tpu.dimension_semantics<arbitrary>], iteration_bounds = array<i64: 1>, scalar_prefetch = 0 : i64, scratch_operands = 1 : i64, tpu.core_type = #tpu.core_type<tc>, window_params = [{pipeline_mode = #tpu.pipeline_mode<synchronous>, transform_indices = @transform_0, window_bounds = array<i64: 8, 128>}, {pipeline_mode = #tpu.pipeline_mode<synchronous>, transform_indices = @transform_1, window_bounds = array<i64: 128, 128>}, {pipeline_mode = #tpu.pipeline_mode<synchronous>, transform_indices = @transform_2, window_bounds = array<i64: 3, 128>}, {pipeline_mode = #tpu.pipeline_mode<synchronous>, transform_indices = @transform_3, window_bounds = array<i64: 2, 128, 128>}, {pipeline_mode = #tpu.pipeline_mode<synchronous>, transform_indices = @transform_4, window_bounds = array<i64: 2, 3, 128>}, {pipeline_mode = #tpu.pipeline_mode<synchronous>, transform_indices = @transform_5, window_bounds = array<i64: 128, 128>}, {pipeline_mode = #tpu.pipeline_mode<synchronous>, transform_indices = @transform_6, window_bounds = array<i64: 1, 128>}, {pipeline_mode = #tpu.pipeline_mode<synchronous>, transform_indices = @transform_7, window_bounds = array<i64: 8, 128>}]} {
    %c0_i32 = arith.constant 0 : i32
    %0 = arith.cmpi eq, %arg0, %c0_i32 : i32
    %1 = arith.extui %0 : i1 to i32
    %cst = arith.constant 0.00999999977 : f32
    %cst_0 = arith.constant 1.250000e-01 : f32
    %cst_1 = arith.constant 9.99999974E-6 : f32
    %c0_i32_2 = arith.constant 0 : i32
    %2 = arith.cmpi ne, %1, %c0_i32_2 : i32
    scf.if %2 {
      %c0_37 = arith.constant 0 : index
      %c0_38 = arith.constant 0 : index
      %86 = vector.load %arg3[%c0_37, %c0_38] : memref<3x128xf32, #tpu.memory_space<vmem>>, vector<3x128xf32>
      %c0_39 = arith.constant 0 : index
      %c0_40 = arith.constant 0 : index
      %87 = vector.load %arg1[%c0_39, %c0_40] : memref<8x128xf32, #tpu.memory_space<vmem>>, vector<8x128xf32>
      %c0_41 = arith.constant 0 : index
      %c0_42 = arith.constant 0 : index
      %88 = vector.load %arg2[%c0_41, %c0_42] : memref<128x128xf32, #tpu.memory_space<vmem>>, vector<128x128xf32>
      %cst_43 = arith.constant dense<0.000000e+00> : vector<8x128xf32>
      %89 = tpu.matmul %87, %88, %cst_43 {dimension_numbers = #tpu.dot_dimension_numbers<[1], [0], [0], [1], [0, 0, 1, 1], [], []>} : vector<8x128xf32>, vector<128x128xf32>, vector<8x128xf32> -> vector<8x128xf32>
      %90 = vector.extract_strided_slice %86 {offsets = [0, 0], sizes = [1, 128], strides = [1, 1]} : vector<3x128xf32> to vector<1x128xf32>
      %91 = vector.broadcast %90 : vector<1x128xf32> to vector<8x128xf32>
      %92 = arith.addf %89, %91 : vector<8x128xf32>
      %cst_44 = arith.constant 0.000000e+00 : f32
      %93 = vector.broadcast %cst_44 : f32 to vector<8x128xf32>
      %94 = arith.cmpf oge, %92, %93 : vector<8x128xf32>
      %95 = vector.broadcast %cst : f32 to vector<8x128xf32>
      %96 = arith.mulf %95, %92 : vector<8x128xf32>
      %97 = arith.select %94, %92, %96 : vector<8x128xi1>, vector<8x128xf32>
      %98 = vector.extract_strided_slice %86 {offsets = [1, 0], sizes = [1, 128], strides = [1, 1]} : vector<3x128xf32> to vector<1x128xf32>
      %99 = vector.extract_strided_slice %86 {offsets = [2, 0], sizes = [1, 128], strides = [1, 1]} : vector<3x128xf32> to vector<1x128xf32>
      %cst_45 = arith.constant dense<0.000000e+00> : vector<128xf32>
      %100 = vector.multi_reduction <add>, %97, %cst_45 [0] : vector<8x128xf32> to vector<128xf32>
      %101 = vector.shape_cast %100 : vector<128xf32> to vector<1x128xf32>
      %102 = vector.broadcast %cst_0 : f32 to vector<1x128xf32>
      %103 = arith.mulf %101, %102 : vector<1x128xf32>
      %104 = arith.mulf %97, %97 : vector<8x128xf32>
      %cst_46 = arith.constant dense<0.000000e+00> : vector<128xf32>
      %105 = vector.multi_reduction <add>, %104, %cst_46 [0] : vector<8x128xf32> to vector<128xf32>
      %106 = vector.shape_cast %105 : vector<128xf32> to vector<1x128xf32>
      %107 = vector.broadcast %cst_0 : f32 to vector<1x128xf32>
      %108 = arith.mulf %106, %107 : vector<1x128xf32>
      %109 = arith.mulf %103, %103 : vector<1x128xf32>
      %110 = arith.subf %108, %109 : vector<1x128xf32>
      %cst_47 = arith.constant 0.000000e+00 : f32
      %111 = vector.broadcast %cst_47 : f32 to vector<1x128xf32>
      %112 = arith.maximumf %110, %111 : vector<1x128xf32>
      %113 = vector.broadcast %cst_1 : f32 to vector<1x128xf32>
      %114 = arith.addf %112, %113 : vector<1x128xf32>
      %115 = math.rsqrt %114 : vector<1x128xf32>
      %116 = arith.mulf %98, %115 : vector<1x128xf32>
      %117 = arith.mulf %103, %116 : vector<1x128xf32>
      %118 = arith.subf %99, %117 : vector<1x128xf32>
      %119 = vector.broadcast %116 : vector<1x128xf32> to vector<8x128xf32>
      %120 = arith.mulf %97, %119 : vector<8x128xf32>
      %121 = vector.broadcast %118 : vector<1x128xf32> to vector<8x128xf32>
      %122 = arith.addf %120, %121 : vector<8x128xf32>
      %c0_48 = arith.constant 0 : index
      %c0_49 = arith.constant 0 : index
      %123 = vector.load %arg9[%c0_48, %c0_49] : memref<8x128xf32, #tpu.memory_space<vmem>>, vector<8x128xf32>
      tpu.vector_store %arg9[%c0_48, %c0_49], %122 {strides = array<i32>} : memref<8x128xf32, #tpu.memory_space<vmem>>, vector<8x128xf32>,
    } else {
    }
    %c0 = arith.constant 0 : index
    %c0_3 = arith.constant 0 : index
    %3 = vector.load %arg9[%c0, %c0_3] : memref<8x128xf32, #tpu.memory_space<vmem>>, vector<8x128xf32>
    %c0_4 = arith.constant 0 : index
    %c0_5 = arith.constant 0 : index
    %c0_6 = arith.constant 0 : index
    %4 = vector.load %arg5[%c0_4, %c0_5, %c0_6] : memref<2x3x128xf32, #tpu.memory_space<vmem>>, vector<1x3x128xf32>
    %5 = vector.shape_cast %4 : vector<1x3x128xf32> to vector<3x128xf32>
    %c0_7 = arith.constant 0 : index
    %c0_8 = arith.constant 0 : index
    %c0_9 = arith.constant 0 : index
    %6 = vector.load %arg4[%c0_7, %c0_8, %c0_9] : memref<2x128x128xf32, #tpu.memory_space<vmem>>, vector<1x128x128xf32>
    %7 = vector.shape_cast %6 : vector<1x128x128xf32> to vector<128x128xf32>
    %cst_10 = arith.constant dense<0.000000e+00> : vector<8x128xf32>
    %8 = tpu.matmul %3, %7, %cst_10 {dimension_numbers = #tpu.dot_dimension_numbers<[1], [0], [0], [1], [0, 0, 1, 1], [], []>} : vector<8x128xf32>, vector<128x128xf32>, vector<8x128xf32> -> vector<8x128xf32>
    %9 = vector.extract_strided_slice %5 {offsets = [0, 0], sizes = [1, 128], strides = [1, 1]} : vector<3x128xf32> to vector<1x128xf32>
    %10 = vector.broadcast %9 : vector<1x128xf32> to vector<8x128xf32>
    %11 = arith.addf %8, %10 : vector<8x128xf32>
    %cst_11 = arith.constant 0.000000e+00 : f32
    %12 = vector.broadcast %cst_11 : f32 to vector<8x128xf32>
    %13 = arith.cmpf oge, %11, %12 : vector<8x128xf32>
    %cst_12 = arith.constant 0.00999999977 : f32
    %14 = vector.broadcast %cst_12 : f32 to vector<8x128xf32>
    %15 = arith.mulf %14, %11 : vector<8x128xf32>
    %16 = arith.select %13, %11, %15 : vector<8x128xi1>, vector<8x128xf32>
    %17 = arith.addf %3, %16 : vector<8x128xf32>
    %18 = vector.extract_strided_slice %5 {offsets = [1, 0], sizes = [1, 128], strides = [1, 1]} : vector<3x128xf32> to vector<1x128xf32>
    %19 = vector.extract_strided_slice %5 {offsets = [2, 0], sizes = [1, 128], strides = [1, 1]} : vector<3x128xf32> to vector<1x128xf32>
    %cst_13 = arith.constant dense<0.000000e+00> : vector<128xf32>
    %20 = vector.multi_reduction <add>, %17, %cst_13 [0] : vector<8x128xf32> to vector<128xf32>
    %21 = vector.shape_cast %20 : vector<128xf32> to vector<1x128xf32>
    %cst_14 = arith.constant 1.250000e-01 : f32
    %22 = vector.broadcast %cst_14 : f32 to vector<1x128xf32>
    %23 = arith.mulf %21, %22 : vector<1x128xf32>
    %24 = arith.mulf %17, %17 : vector<8x128xf32>
    %cst_15 = arith.constant dense<0.000000e+00> : vector<128xf32>
    %25 = vector.multi_reduction <add>, %24, %cst_15 [0] : vector<8x128xf32> to vector<128xf32>
    %26 = vector.shape_cast %25 : vector<128xf32> to vector<1x128xf32>
    %cst_16 = arith.constant 1.250000e-01 : f32
    %27 = vector.broadcast %cst_16 : f32 to vector<1x128xf32>
    %28 = arith.mulf %26, %27 : vector<1x128xf32>
    %29 = arith.mulf %23, %23 : vector<1x128xf32>
    %30 = arith.subf %28, %29 : vector<1x128xf32>
    %cst_17 = arith.constant 0.000000e+00 : f32
    %31 = vector.broadcast %cst_17 : f32 to vector<1x128xf32>
    %32 = arith.maximumf %30, %31 : vector<1x128xf32>
    %cst_18 = arith.constant 9.99999974E-6 : f32
    %33 = vector.broadcast %cst_18 : f32 to vector<1x128xf32>
    %34 = arith.addf %32, %33 : vector<1x128xf32>
    %35 = math.rsqrt %34 : vector<1x128xf32>
    %36 = arith.mulf %18, %35 : vector<1x128xf32>
    %37 = arith.mulf %23, %36 : vector<1x128xf32>
    %38 = arith.subf %19, %37 : vector<1x128xf32>
    %39 = vector.broadcast %36 : vector<1x128xf32> to vector<8x128xf32>
    %40 = arith.mulf %17, %39 : vector<8x128xf32>
    %41 = vector.broadcast %38 : vector<1x128xf32> to vector<8x128xf32>
    %42 = arith.addf %40, %41 : vector<8x128xf32>
    %c1 = arith.constant 1 : index
    %c0_19 = arith.constant 0 : index
    %c0_20 = arith.constant 0 : index
    %43 = vector.load %arg5[%c1, %c0_19, %c0_20] : memref<2x3x128xf32, #tpu.memory_space<vmem>>, vector<1x3x128xf32>
    %44 = vector.shape_cast %43 : vector<1x3x128xf32> to vector<3x128xf32>
    %c1_21 = arith.constant 1 : index
    %c0_22 = arith.constant 0 : index
    %c0_23 = arith.constant 0 : index
    %45 = vector.load %arg4[%c1_21, %c0_22, %c0_23] : memref<2x128x128xf32, #tpu.memory_space<vmem>>, vector<1x128x128xf32>
    %46 = vector.shape_cast %45 : vector<1x128x128xf32> to vector<128x128xf32>
    %cst_24 = arith.constant dense<0.000000e+00> : vector<8x128xf32>
    %47 = tpu.matmul %42, %46, %cst_24 {dimension_numbers = #tpu.dot_dimension_numbers<[1], [0], [0], [1], [0, 0, 1, 1], [], []>} : vector<8x128xf32>, vector<128x128xf32>, vector<8x128xf32> -> vector<8x128xf32>
    %48 = vector.extract_strided_slice %44 {offsets = [0, 0], sizes = [1, 128], strides = [1, 1]} : vector<3x128xf32> to vector<1x128xf32>
    %49 = vector.broadcast %48 : vector<1x128xf32> to vector<8x128xf32>
    %50 = arith.addf %47, %49 : vector<8x128xf32>
    %cst_25 = arith.constant 0.000000e+00 : f32
    %51 = vector.broadcast %cst_25 : f32 to vector<8x128xf32>
    %52 = arith.cmpf oge, %50, %51 : vector<8x128xf32>
    %cst_26 = arith.constant 0.00999999977 : f32
    %53 = vector.broadcast %cst_26 : f32 to vector<8x128xf32>
    %54 = arith.mulf %53, %50 : vector<8x128xf32>
    %55 = arith.select %52, %50, %54 : vector<8x128xi1>, vector<8x128xf32>
    %56 = arith.addf %42, %55 : vector<8x128xf32>
    %57 = vector.extract_strided_slice %44 {offsets = [1, 0], sizes = [1, 128], strides = [1, 1]} : vector<3x128xf32> to vector<1x128xf32>
    %58 = vector.extract_strided_slice %44 {offsets = [2, 0], sizes = [1, 128], strides = [1, 1]} : vector<3x128xf32> to vector<1x128xf32>
    %cst_27 = arith.constant dense<0.000000e+00> : vector<128xf32>
    %59 = vector.multi_reduction <add>, %56, %cst_27 [0] : vector<8x128xf32> to vector<128xf32>
    %60 = vector.shape_cast %59 : vector<128xf32> to vector<1x128xf32>
    %cst_28 = arith.constant 1.250000e-01 : f32
    %61 = vector.broadcast %cst_28 : f32 to vector<1x128xf32>
    %62 = arith.mulf %60, %61 : vector<1x128xf32>
    %63 = arith.mulf %56, %56 : vector<8x128xf32>
    %cst_29 = arith.constant dense<0.000000e+00> : vector<128xf32>
    %64 = vector.multi_reduction <add>, %63, %cst_29 [0] : vector<8x128xf32> to vector<128xf32>
    %65 = vector.shape_cast %64 : vector<128xf32> to vector<1x128xf32>
    %cst_30 = arith.constant 1.250000e-01 : f32
    %66 = vector.broadcast %cst_30 : f32 to vector<1x128xf32>
    %67 = arith.mulf %65, %66 : vector<1x128xf32>
    %68 = arith.mulf %62, %62 : vector<1x128xf32>
    %69 = arith.subf %67, %68 : vector<1x128xf32>
    %cst_31 = arith.constant 0.000000e+00 : f32
    %70 = vector.broadcast %cst_31 : f32 to vector<1x128xf32>
    %71 = arith.maximumf %69, %70 : vector<1x128xf32>
    %cst_32 = arith.constant 9.99999974E-6 : f32
    %72 = vector.broadcast %cst_32 : f32 to vector<1x128xf32>
    %73 = arith.addf %71, %72 : vector<1x128xf32>
    %74 = math.rsqrt %73 : vector<1x128xf32>
    %75 = arith.mulf %57, %74 : vector<1x128xf32>
    %76 = arith.mulf %62, %75 : vector<1x128xf32>
    %77 = arith.subf %58, %76 : vector<1x128xf32>
    %78 = vector.broadcast %75 : vector<1x128xf32> to vector<8x128xf32>
    %79 = arith.mulf %56, %78 : vector<8x128xf32>
    %80 = vector.broadcast %77 : vector<1x128xf32> to vector<8x128xf32>
    %81 = arith.addf %79, %80 : vector<8x128xf32>
    %c0_33 = arith.constant 0 : index
    %c0_34 = arith.constant 0 : index
    %82 = vector.load %arg9[%c0_33, %c0_34] : memref<8x128xf32, #tpu.memory_space<vmem>>, vector<8x128xf32>
    tpu.vector_store %arg9[%c0_33, %c0_34], %81 {strides = array<i32>} : memref<8x128xf32, #tpu.memory_space<vmem>>, vector<8x128xf32>,
    %c0_i32_35 = arith.constant 0 : i32
    %83 = arith.cmpi eq, %arg0, %c0_i32_35 : i32
    %84 = arith.extui %83 : i1 to i32
    %c0_i32_36 = arith.constant 0 : i32
    %85 = arith.cmpi ne, %84, %c0_i32_36 : i32
    scf.if %85 {
      %c0_37 = arith.constant 0 : index
      %c0_38 = arith.constant 0 : index
      %86 = vector.load %arg9[%c0_37, %c0_38] : memref<8x128xf32, #tpu.memory_space<vmem>>, vector<8x128xf32>
      %c0_39 = arith.constant 0 : index
      %c0_40 = arith.constant 0 : index
      %87 = vector.load %arg6[%c0_39, %c0_40] : memref<128x128xf32, #tpu.memory_space<vmem>>, vector<128x128xf32>
      %cst_41 = arith.constant dense<0.000000e+00> : vector<8x128xf32>
      %88 = tpu.matmul %86, %87, %cst_41 {dimension_numbers = #tpu.dot_dimension_numbers<[1], [0], [0], [1], [0, 0, 1, 1], [], []>} : vector<8x128xf32>, vector<128x128xf32>, vector<8x128xf32> -> vector<8x128xf32>
      %c0_42 = arith.constant 0 : index
      %c0_43 = arith.constant 0 : index
      %89 = vector.load %arg7[%c0_42, %c0_43] : memref<1x128xf32, #tpu.memory_space<vmem>>, vector<1x128xf32>
      %90 = vector.broadcast %89 : vector<1x128xf32> to vector<8x128xf32>
      %91 = arith.addf %88, %90 : vector<8x128xf32>
      %c0_44 = arith.constant 0 : index
      %c0_45 = arith.constant 0 : index
      %92 = vector.load %arg8[%c0_44, %c0_45] : memref<8x128xf32, #tpu.memory_space<vmem>>, vector<8x128xf32>
      tpu.vector_store %arg8[%c0_44, %c0_45], %91 {strides = array<i32>} : memref<8x128xf32, #tpu.memory_space<vmem>>, vector<8x128xf32>,
    } else {
    }
    return
  }
  func.func @transform_0(%arg0: i32) -> (i32, i32) {
    %c0_i32 = arith.constant 0 : i32
    %c0_i32_0 = arith.constant 0 : i32
    %c0_i32_1 = arith.constant 0 : i32
    return %c0_i32, %c0_i32_0 : i32, i32
  }
  func.func @transform_1(%arg0: i32) -> (i32, i32) {
    %c0_i32 = arith.constant 0 : i32
    %c0_i32_0 = arith.constant 0 : i32
    %c0_i32_1 = arith.constant 0 : i32
    return %c0_i32, %c0_i32_0 : i32, i32
  }
  func.func @transform_2(%arg0: i32) -> (i32, i32) {
    %c0_i32 = arith.constant 0 : i32
    %c0_i32_0 = arith.constant 0 : i32
    %c0_i32_1 = arith.constant 0 : i32
    return %c0_i32, %c0_i32_0 : i32, i32
  }
  func.func @transform_3(%arg0: i32) -> (i32, i32, i32) {
    %c0_i32 = arith.constant 0 : i32
    %c0_i32_0 = arith.constant 0 : i32
    %c0_i32_1 = arith.constant 0 : i32
    %c0_i32_2 = arith.constant 0 : i32
    return %c0_i32, %c0_i32_0, %c0_i32_1 : i32, i32, i32
  }
  func.func @transform_4(%arg0: i32) -> (i32, i32, i32) {
    %c0_i32 = arith.constant 0 : i32
    %c0_i32_0 = arith.constant 0 : i32
    %c0_i32_1 = arith.constant 0 : i32
    %c0_i32_2 = arith.constant 0 : i32
    return %c0_i32, %c0_i32_0, %c0_i32_1 : i32, i32, i32
  }
  func.func @transform_5(%arg0: i32) -> (i32, i32) {
    %c0_i32 = arith.constant 0 : i32
    %c0_i32_0 = arith.constant 0 : i32
    %c0_i32_1 = arith.constant 0 : i32
    return %c0_i32, %c0_i32_0 : i32, i32
  }
  func.func @transform_6(%arg0: i32) -> (i32, i32) {
    %c0_i32 = arith.constant 0 : i32
    %c0_i32_0 = arith.constant 0 : i32
    %c0_i32_1 = arith.constant 0 : i32
    return %c0_i32, %c0_i32_0 : i32, i32
  }
  func.func @transform_7(%arg0: i32) -> (i32, i32) {
    %c0_i32 = arith.constant 0 : i32
    %c0_i32_0 = arith.constant 0 : i32
    %c0_i32_1 = arith.constant 0 : i32
    return %c0_i32, %c0_i32_0 : i32, i32
  }
}

</mosaic_0001>

<llo_original>
// kernel: tpu_custom_call.1
$region0: #{tpu_custom_call.1}
  #allocation0 [shape = 'u32[]', space=smem, size = 0x4, offset = 0x4, fixed_abs, tag = 'smem constant byte address 0x4 - core index']
  #allocation1 [shape = 'u32[144,128]{1,0:T(1,128)}', space=vmem, size = 0x12000, scoped, tag = 'internal scratch']
  #allocation2 [shape = 'f32[8,128]{1,0:T(8,128)}', space=vmem, size = 0x1000, scoped, tag = 'scratch operand']
  %s0 = inlined_call_operand.vmem [shape: f32[8,128], index: 0, kind: input, shape index: {}]
  %s1 = inlined_call_operand.hbm [shape: f32[128,128], index: 1, kind: input, shape index: {}]
  %s2 = inlined_call_operand.vmem [shape: f32[3,128], index: 2, kind: input, shape index: {}]
  %s3 = inlined_call_operand.hbm [shape: f32[2,128,128], index: 3, kind: input, shape index: {}]
  %s4 = inlined_call_operand.vmem [shape: f32[2,3,128], index: 4, kind: input, shape index: {}]
  %s5 = inlined_call_operand.hbm [shape: f32[128,128], index: 5, kind: input, shape index: {}]
  %s6 = inlined_call_operand.vmem [shape: f32[1,128], index: 6, kind: input, shape index: {}]
  %s7 = inlined_call_operand.hbm [shape: f32[8,128], index: 7, kind: output, shape index: {}]
  %s8 = sld [smem:[#allocation0]]
  $region58: #{tpu_custom_call.1} parent=0
    _
  %s10 = ssub.s32 1, %s8
  %s11 = scalar_select 0, %s10, %s8
  $region1: #{tpu_custom_call.1} parent=0
    #allocation3 [shape = 'u8[65536]{0}', space=vmem, size = 0x10000, scoped, tag = 'input window, operand 1, single buffered']
    #allocation4 [shape = 's32[1]{0}', space=sflag, size = 0x4, scoped, tag = 'scoped memory for tpu_custom_call.1']
    #allocation5 [shape = 's32[1]{0}', space=sflag, size = 0x4, scoped, tag = 'scoped memory for tpu_custom_call.1']
    #allocation6 [shape = 'u8[131072]{0}', space=vmem, size = 0x20000, scoped, tag = 'input window, operand 3, single buffered']
    #allocation7 [shape = 's32[1]{0}', space=sflag, size = 0x4, scoped, tag = 'scoped memory for tpu_custom_call.1']
    #allocation8 [shape = 'u8[65536]{0}', space=vmem, size = 0x10000, scoped, tag = 'input window, operand 5, single buffered']
    #allocation9 [shape = 'u8[4096]{0}', space=vmem, size = 0x1000, scoped, tag = 'output window, operand 0, single buffered']
    %12 = vsyncpa [#allocation4], 0
    %13 = vsyncpa [#allocation7], 0
    %14 = vsyncpa [#allocation5], 0
    // Predicated region
    $region2: #{tpu_custom_call.1} parent=1 // pred_check
      _
    $region3: #{tpu_custom_call.1} parent=1 // pred_check_branch
      %16 = sbr.rel (0) target = $region5
    $region4: #{tpu_custom_call.1} parent=1 // pred_region
      _
    $region5: #{tpu_custom_call.1} parent=1 // pred_fallthru
      _
    // Predicated region
    $region6: #{tpu_custom_call.1} parent=1 // pred_check
      _
    $region7: #{tpu_custom_call.1} parent=1 // pred_check_branch
      %18 = sbr.rel (0) target = $region9
    $region8: #{tpu_custom_call.1} parent=1 // pred_region
      %s20 = ssub.s32 2048, 2048
      %21 = vsyncadd [#allocation4], %s20
      %s22 = sshll.u32 [#allocation3], 4
      %s23 = int_to_ptr.vmem [resolvable:$true] %s22
      %28 = dma.hbm_to_vmem [thread:$0]  %s1, 2048, %s23, [#allocation4], 128, 128, 8
    $region9: #{tpu_custom_call.1} parent=1 // pred_fallthru
      _
    // Predicated region
    $region10: #{tpu_custom_call.1} parent=1 // pred_check
      _
    $region11: #{tpu_custom_call.1} parent=1 // pred_check_branch
      %30 = sbr.rel (0) target = $region13
    $region12: #{tpu_custom_call.1} parent=1 // pred_region
      _
    $region13: #{tpu_custom_call.1} parent=1 // pred_fallthru
      _
    // Predicated region
    $region14: #{tpu_custom_call.1} parent=1 // pred_check
      _
    $region15: #{tpu_custom_call.1} parent=1 // pred_check_branch
      %32 = sbr.rel (0) target = $region17
    $region16: #{tpu_custom_call.1} parent=1 // pred_region
      %s34 = ssub.s32 4096, 4096
      %35 = vsyncadd [#allocation7], %s34
      %s36 = sshll.u32 [#allocation6], 4
      %s37 = int_to_ptr.vmem [resolvable:$true] %s36
      %42 = dma.hbm_to_vmem [thread:$0]  %s3, 4096, %s37, [#allocation7], 128, 128, 8
    $region17: #{tpu_custom_call.1} parent=1 // pred_fallthru
      _
    // Predicated region
    $region18: #{tpu_custom_call.1} parent=1 // pred_check
      _
    $region19: #{tpu_custom_call.1} parent=1 // pred_check_branch
      %44 = sbr.rel (0) target = $region21
    $region20: #{tpu_custom_call.1} parent=1 // pred_region
      _
    $region21: #{tpu_custom_call.1} parent=1 // pred_fallthru
      _
    // Predicated region
    $region22: #{tpu_custom_call.1} parent=1 // pred_check
      _
    $region23: #{tpu_custom_call.1} parent=1 // pred_check_branch
      %46 = sbr.rel (0) target = $region25
    $region24: #{tpu_custom_call.1} parent=1 // pred_region
      %s48 = ssub.s32 2048, 2048
      %49 = vsyncadd [#allocation7], %s48
      %s50 = sshll.u32 [#allocation8], 4
      %s51 = int_to_ptr.vmem [resolvable:$true] %s50
      %56 = dma.hbm_to_vmem [thread:$0]  %s5, 2048, %s51, [#allocation7], 128, 128, 8
    $region25: #{tpu_custom_call.1} parent=1 // pred_fallthru
      _
    // Predicated region
    $region26: #{tpu_custom_call.1} parent=1 // pred_check
      _
    $region27: #{tpu_custom_call.1} parent=1 // pred_check_branch
      %58 = sbr.rel (0) target = $region29
    $region28: #{tpu_custom_call.1} parent=1 // pred_region
      _
    $region29: #{tpu_custom_call.1} parent=1 // pred_fallthru
      _
    // Predicated region
    $region30: #{tpu_custom_call.1} parent=1 // pred_check
      _
    $region31: #{tpu_custom_call.1} parent=1 // pred_check_branch
      %60 = sbr.rel (0) target = $region33
    $region32: #{tpu_custom_call.1} parent=1 // pred_region
      %61 = dma.done [#allocation4], 2048
    $region33: #{tpu_custom_call.1} parent=1 // pred_fallthru
      _
    // Predicated region
    $region34: #{tpu_custom_call.1} parent=1 // pred_check
      _
    $region35: #{tpu_custom_call.1} parent=1 // pred_check_branch
      %63 = sbr.rel (0) target = $region37
    $region36: #{tpu_custom_call.1} parent=1 // pred_region
      %64 = dma.done [#allocation7], 4096
    $region37: #{tpu_custom_call.1} parent=1 // pred_fallthru
      _
    // Predicated region
    $region38: #{tpu_custom_call.1} parent=1 // pred_check
      _
    $region39: #{tpu_custom_call.1} parent=1 // pred_check_branch
      %66 = sbr.rel (0) target = $region41
    $region40: #{tpu_custom_call.1} parent=1 // pred_region
      %67 = dma.done [#allocation7], 2048
    $region41: #{tpu_custom_call.1} parent=1 // pred_fallthru
      _
    %p68 = scmp.eq.s32.totalorder 0, 0
    // Predicated region
    $region42: #{tpu_custom_call.1} parent=1 // pred_check
      %p69 = pneg %p68
    $region43: #{tpu_custom_call.1} parent=1 // pred_check_branch
      %71 = sbr.rel (%p69) target = $region45
    $region44: #{tpu_custom_call.1} parent=1 // pred_region
      %v72 = vld [vmem:[%s2] sm:$0x7]
      %v73 = vld [vmem:[%s0] sm:$0xff]
      %v74 = vld [vmem:[#allocation3] sm:$0xff]
      %v75 = vld [vmem:[#allocation3 + $0x8] sm:$0xff]
      %v76 = vld [vmem:[#allocation3 + $0x10] sm:$0xff]
      %v77 = vld [vmem:[#allocation3 + $0x18] sm:$0xff]
      %v78 = vld [vmem:[#allocation3 + $0x20] sm:$0xff]
      %v79 = vld [vmem:[#allocation3 + $0x28] sm:$0xff]
      %v80 = vld [vmem:[#allocation3 + $0x30] sm:$0xff]
      %v81 = vld [vmem:[#allocation3 + $0x38] sm:$0xff]
      %v82 = vld [vmem:[#allocation3 + $0x40] sm:$0xff]
      %v83 = vld [vmem:[#allocation3 + $0x48] sm:$0xff]
      %v84 = vld [vmem:[#allocation3 + $0x50] sm:$0xff]
      %v85 = vld [vmem:[#allocation3 + $0x58] sm:$0xff]
      %v86 = vld [vmem:[#allocation3 + $0x60] sm:$0xff]
      %v87 = vld [vmem:[#allocation3 + $0x68] sm:$0xff]
      %v88 = vld [vmem:[#allocation3 + $0x70] sm:$0xff]
      %v89 = vld [vmem:[#allocation3 + $0x78] sm:$0xff]
      %v90 = vlaneseq
      %v91 = vshrl.u32 %v90, 7
      %v92 = vsub.s32 0, %v91
      %v93 = vrot.slane %v72, %v92
      %94 = vmatprep.subr.mxu0 0.0
      %95 = vmatpush1.msra.mxu0 %v74
      %96 = vmatprep.subr.mxu0 0.0
      %97 = vmatpush1.msra.mxu0 %v75
      %98 = vmatprep.subr.mxu0 0.0
      %99 = vmatpush1.msra.mxu0 %v76
      %100 = vmatprep.subr.mxu0 0.0
      %101 = vmatpush1.msra.mxu0 %v77
      %102 = vmatprep.subr.mxu0 0.0
      %103 = vmatpush1.msra.mxu0 %v78
      %104 = vmatprep.subr.mxu0 0.0
      %105 = vmatpush1.msra.mxu0 %v79
      %106 = vmatprep.subr.mxu0 0.0
      %107 = vmatpush1.msra.mxu0 %v80
      %108 = vmatprep.subr.mxu0 0.0
      %109 = vmatpush1.msra.mxu0 %v81
      %110 = vmatprep.subr.mxu0 0.0
      %111 = vmatpush1.msra.mxu0 %v82
      %112 = vmatprep.subr.mxu0 0.0
      %113 = vmatpush1.msra.mxu0 %v83
      %114 = vmatprep.subr.mxu0 0.0
      %115 = vmatpush1.msra.mxu0 %v84
      %116 = vmatprep.subr.mxu0 0.0
      %117 = vmatpush1.msra.mxu0 %v85
      %118 = vmatprep.subr.mxu0 0.0
      %119 = vmatpush1.msra.mxu0 %v86
      %120 = vmatprep.subr.mxu0 0.0
      %121 = vmatpush1.msra.mxu0 %v87
      %122 = vmatprep.subr.mxu0 0.0
      %123 = vmatpush1.msra.mxu0 %v88
      %124 = vmatprep.subr.mxu0 0.0
      %125 = vmatpush1.msra.mxu0 %v89
      %126 = vmatprep.subr.mxu0 0.0
      %127 = vmatpush1.msra.mxu0 0.0
      %128 = vmatprep.subr.mxu0 0.0
      %129 = vmatpush1.msra.mxu0 0.0
      %130 = vmatprep.subr.mxu0 0.0
      %131 = vmatpush1.msra.mxu0 0.0
      %132 = vmatprep.subr.mxu0 0.0
      %133 = vmatpush1.msra.mxu0 0.0
      %134 = vmatprep.subr.mxu0 0.0
      %135 = vmatpush1.msra.mxu0 0.0
      %136 = vmatprep.subr.mxu0 0.0
      %137 = vmatpush1.msra.mxu0 0.0
      %138 = vmatprep.subr.mxu0 0.0
      %139 = vmatpush1.msra.mxu0 0.0
      %140 = vmatprep.subr.mxu0 0.0
      %141 = vmatpush1.msra.mxu0 0.0
      %142 = vmatprep.subr.mxu0 0.0
      %143 = vmatpush1.msra.mxu0 0.0
      %144 = vmatprep.subr.mxu0 0.0
      %145 = vmatpush1.msra.mxu0 0.0
      %146 = vmatprep.subr.mxu0 0.0
      %147 = vmatpush1.msra.mxu0 0.0
      %148 = vmatprep.subr.mxu0 0.0
      %149 = vmatpush1.msra.mxu0 0.0
      %150 = vmatprep.subr.mxu0 0.0
      %151 = vmatpush1.msra.mxu0 0.0
      %152 = vmatprep.subr.mxu0 0.0
      %153 = vmatpush1.msra.mxu0 0.0
      %154 = vmatprep.subr.mxu0 0.0
      %155 = vmatpush1.msra.mxu0 0.0
      %156 = vmatprep.subr.mxu0 0.0
      %157 = vmatpush1.msra.mxu0 0.0
      %158 = vmatprep.mubr.f32.mxu0 0.0
      %159 = vmatmul.mubr.f32.gmra.mrb[0].mxu0 %v73
      %v160 = vpop.f32.mrb[0].mxu0
      %v161 = vadd.f32 %v93, %v160
      %v162 = vpop.f32.mrb[0].mxu0
      %163 = vdwg.mxu0
      %vm164 = vcmp.ge.f32.partialorder %v161, 0.0
      %v165 = vmul.f32 %v161, 0.01
      %v166 = vsel %vm164, %v161, %v165
      %v167 = vrot.slane %v166, 4
      %v168 = vadd.f32 %v166, %v167
      %v169 = vrot.slane %v168, 2
      %v170 = vadd.f32 %v168, %v169
      %v171 = vrot.slane %v170, 1
      %v172 = vadd.f32 %v170, %v171
      %v173 = vmul.f32 %v172, 0.125
      %v174 = vmul.f32 %v166, %v166
      %v175 = vrot.slane %v174, 4
      %v176 = vadd.f32 %v174, %v175
      %v177 = vrot.slane %v176, 2
      %v178 = vadd.f32 %v176, %v177
      %v179 = vrot.slane %v178, 1
      %v180 = vadd.f32 %v178, %v179
      %v181 = vmul.f32 %v180, 0.125
      %v182 = vmul.f32 %v173, %v173
      %v183 = vsub.f32 %v181, %v182
      %v184 = vmax.f32 %v183, 0.0
      %v185 = vadd.f32 %v184, 1e-05
      %v186 = vrsqrt.pop %v185
      %v187 = vmul.f32 %v72, %v186
      %v188 = vmul.f32 %v173, %v187
      %v190 = vrot.slane %v188, 7
      %v192 = vsub.f32 %v72, %v190
      %v193 = vlaneseq
      %v194 = vshrl.u32 %v193, 7
      %v195 = vsub.s32 1, %v194
      %v196 = vrot.slane %v187, %v195
      %v197 = vmul.f32 %v166, %v196
      %v198 = vlaneseq
      %v199 = vshrl.u32 %v198, 7
      %v200 = vsub.s32 2, %v199
      %v201 = vrot.slane %v192, %v200
      %v202 = vadd.f32 %v197, %v201
      %203 = vst [vmem:[#allocation2] sm:$0xff] %v202
    $region45: #{tpu_custom_call.1} parent=1 // pred_fallthru
      _
    %v204 = vld [vmem:[#allocation2] sm:$0xff]
    %v205 = vld [vmem:[%s4] sm:$0x7]
    %v206 = vld [vmem:[#allocation6] sm:$0xff]
    %v207 = vld [vmem:[#allocation6 + $0x8] sm:$0xff]
    %v208 = vld [vmem:[#allocation6 + $0x10] sm:$0xff]
    %v209 = vld [vmem:[#allocation6 + $0x18] sm:$0xff]
    %v210 = vld [vmem:[#allocation6 + $0x20] sm:$0xff]
    %v211 = vld [vmem:[#allocation6 + $0x28] sm:$0xff]
    %v212 = vld [vmem:[#allocation6 + $0x30] sm:$0xff]
    %v213 = vld [vmem:[#allocation6 + $0x38] sm:$0xff]
    %v214 = vld [vmem:[#allocation6 + $0x40] sm:$0xff]
    %v215 = vld [vmem:[#allocation6 + $0x48] sm:$0xff]
    %v216 = vld [vmem:[#allocation6 + $0x50] sm:$0xff]
    %v217 = vld [vmem:[#allocation6 + $0x58] sm:$0xff]
    %v218 = vld [vmem:[#allocation6 + $0x60] sm:$0xff]
    %v219 = vld [vmem:[#allocation6 + $0x68] sm:$0xff]
    %v220 = vld [vmem:[#allocation6 + $0x70] sm:$0xff]
    %v221 = vld [vmem:[#allocation6 + $0x78] sm:$0xff]
    %v222 = vlaneseq
    %v223 = vshrl.u32 %v222, 7
    %v224 = vsub.s32 0, %v223
    %v225 = vrot.slane %v205, %v224
    %226 = vmatprep.subr.mxu0 0.0
    %227 = vmatpush1.msra.mxu0 %v206
    %228 = vmatprep.subr.mxu0 0.0
    %229 = vmatpush1.msra.mxu0 %v207
    %230 = vmatprep.subr.mxu0 0.0
    %231 = vmatpush1.msra.mxu0 %v208
    %232 = vmatprep.subr.mxu0 0.0
    %233 = vmatpush1.msra.mxu0 %v209
    %234 = vmatprep.subr.mxu0 0.0
    %235 = vmatpush1.msra.mxu0 %v210
    %236 = vmatprep.subr.mxu0 0.0
    %237 = vmatpush1.msra.mxu0 %v211
    %238 = vmatprep.subr.mxu0 0.0
    %239 = vmatpush1.msra.mxu0 %v212
    %240 = vmatprep.subr.mxu0 0.0
    %241 = vmatpush1.msra.mxu0 %v213
    %242 = vmatprep.subr.mxu0 0.0
    %243 = vmatpush1.msra.mxu0 %v214
    %244 = vmatprep.subr.mxu0 0.0
    %245 = vmatpush1.msra.mxu0 %v215
    %246 = vmatprep.subr.mxu0 0.0
    %247 = vmatpush1.msra.mxu0 %v216
    %248 = vmatprep.subr.mxu0 0.0
    %249 = vmatpush1.msra.mxu0 %v217
    %250 = vmatprep.subr.mxu0 0.0
    %251 = vmatpush1.msra.mxu0 %v218
    %252 = vmatprep.subr.mxu0 0.0
    %253 = vmatpush1.msra.mxu0 %v219
    %254 = vmatprep.subr.mxu0 0.0
    %255 = vmatpush1.msra.mxu0 %v220
    %256 = vmatprep.subr.mxu0 0.0
    %257 = vmatpush1.msra.mxu0 %v221
    %258 = vmatprep.subr.mxu0 0.0
    %259 = vmatpush1.msra.mxu0 0.0
    %260 = vmatprep.subr.mxu0 0.0
    %261 = vmatpush1.msra.mxu0 0.0
    %262 = vmatprep.subr.mxu0 0.0
    %263 = vmatpush1.msra.mxu0 0.0
    %264 = vmatprep.subr.mxu0 0.0
    %265 = vmatpush1.msra.mxu0 0.0
    %266 = vmatprep.subr.mxu0 0.0
    %267 = vmatpush1.msra.mxu0 0.0
    %268 = vmatprep.subr.mxu0 0.0
    %269 = vmatpush1.msra.mxu0 0.0
    %270 = vmatprep.subr.mxu0 0.0
    %271 = vmatpush1.msra.mxu0 0.0
    %272 = vmatprep.subr.mxu0 0.0
    %273 = vmatpush1.msra.mxu0 0.0
    %274 = vmatprep.subr.mxu0 0.0
    %275 = vmatpush1.msra.mxu0 0.0
    %276 = vmatprep.subr.mxu0 0.0
    %277 = vmatpush1.msra.mxu0 0.0
    %278 = vmatprep.subr.mxu0 0.0
    %279 = vmatpush1.msra.mxu0 0.0
    %280 = vmatprep.subr.mxu0 0.0
    %281 = vmatpush1.msra.mxu0 0.0
    %282 = vmatprep.subr.mxu0 0.0
    %283 = vmatpush1.msra.mxu0 0.0
    %284 = vmatprep.subr.mxu0 0.0
    %285 = vmatpush1.msra.mxu0 0.0
    %286 = vmatprep.subr.mxu0 0.0
    %287 = vmatpush1.msra.mxu0 0.0
    %288 = vmatprep.subr.mxu0 0.0
    %289 = vmatpush1.msra.mxu0 0.0
    %290 = vmatprep.mubr.f32.mxu0 0.0
    %291 = vmatmul.mubr.f32.gmra.mrb[0].mxu0 %v204
    %v292 = vpop.f32.mrb[0].mxu0
    %v293 = vadd.f32 %v225, %v292
    %v294 = vpop.f32.mrb[0].mxu0
    %295 = vdwg.mxu0
    %vm296 = vcmp.ge.f32.partialorder %v293, 0.0
    %v297 = vmul.f32 %v293, 0.01
    %v298 = vsel %vm296, %v293, %v297
    %v299 = vadd.f32 %v204, %v298
    %v300 = vrot.slane %v299, 4
    %v301 = vadd.f32 %v299, %v300
    %v302 = vrot.slane %v301, 2
    %v303 = vadd.f32 %v301, %v302
    %v304 = vrot.slane %v303, 1
    %v305 = vadd.f32 %v303, %v304
    %v306 = vmul.f32 %v305, 0.125
    %v307 = vmul.f32 %v299, %v299
    %v308 = vrot.slane %v307, 4
    %v309 = vadd.f32 %v307, %v308
    %v310 = vrot.slane %v309, 2
    %v311 = vadd.f32 %v309, %v310
    %v312 = vrot.slane %v311, 1
    %v313 = vadd.f32 %v311, %v312
    %v314 = vmul.f32 %v313, 0.125
    %v315 = vmul.f32 %v306, %v306
    %v316 = vsub.f32 %v314, %v315
    %v317 = vmax.f32 %v316, 0.0
    %v318 = vadd.f32 %v317, 1e-05
    %v319 = vrsqrt.pop %v318
    %v320 = vmul.f32 %v205, %v319
    %v321 = vmul.f32 %v306, %v320
    %v323 = vrot.slane %v321, 7
    %v325 = vsub.f32 %v205, %v323
    %v326 = vlaneseq
    %v327 = vshrl.u32 %v326, 7
    %v328 = vsub.s32 1, %v327
    %v329 = vrot.slane %v320, %v328
    %v330 = vmul.f32 %v299, %v329
    %v331 = vlaneseq
    %v332 = vshrl.u32 %v331, 7
    %v333 = vsub.s32 2, %v332
    %v334 = vrot.slane %v325, %v333
    %v335 = vadd.f32 %v330, %v334
    %s336 = scalar_lea.vmem %s4, 4
    %v337 = vld [vmem:[%s336] sm:$0x7]
    %s338 = scalar_lea.vmem [#allocation6], 128
    %v339 = vld [vmem:[%s338] sm:$0xff]
    %v340 = vld [vmem:[%s338 + $0x8] sm:$0xff]
    %v341 = vld [vmem:[%s338 + $0x10] sm:$0xff]
    %v342 = vld [vmem:[%s338 + $0x18] sm:$0xff]
    %v343 = vld [vmem:[%s338 + $0x20] sm:$0xff]
    %v344 = vld [vmem:[%s338 + $0x28] sm:$0xff]
    %v345 = vld [vmem:[%s338 + $0x30] sm:$0xff]
    %v346 = vld [vmem:[%s338 + $0x38] sm:$0xff]
    %v347 = vld [vmem:[%s338 + $0x40] sm:$0xff]
    %v348 = vld [vmem:[%s338 + $0x48] sm:$0xff]
    %v349 = vld [vmem:[%s338 + $0x50] sm:$0xff]
    %v350 = vld [vmem:[%s338 + $0x58] sm:$0xff]
    %v351 = vld [vmem:[%s338 + $0x60] sm:$0xff]
    %v352 = vld [vmem:[%s338 + $0x68] sm:$0xff]
    %v353 = vld [vmem:[%s338 + $0x70] sm:$0xff]
    %v354 = vld [vmem:[%s338 + $0x78] sm:$0xff]
    %v355 = vlaneseq
    %v356 = vshrl.u32 %v355, 7
    %v357 = vsub.s32 0, %v356
    %v358 = vrot.slane %v337, %v357
    %359 = vmatprep.subr.mxu0 0.0
    %360 = vmatpush1.msra.mxu0 %v339
    %361 = vmatprep.subr.mxu0 0.0
    %362 = vmatpush1.msra.mxu0 %v340
    %363 = vmatprep.subr.mxu0 0.0
    %364 = vmatpush1.msra.mxu0 %v341
    %365 = vmatprep.subr.mxu0 0.0
    %366 = vmatpush1.msra.mxu0 %v342
    %367 = vmatprep.subr.mxu0 0.0
    %368 = vmatpush1.msra.mxu0 %v343
    %369 = vmatprep.subr.mxu0 0.0
    %370 = vmatpush1.msra.mxu0 %v344
    %371 = vmatprep.subr.mxu0 0.0
    %372 = vmatpush1.msra.mxu0 %v345
    %373 = vmatprep.subr.mxu0 0.0
    %374 = vmatpush1.msra.mxu0 %v346
    %375 = vmatprep.subr.mxu0 0.0
    %376 = vmatpush1.msra.mxu0 %v347
    %377 = vmatprep.subr.mxu0 0.0
    %378 = vmatpush1.msra.mxu0 %v348
    %379 = vmatprep.subr.mxu0 0.0
    %380 = vmatpush1.msra.mxu0 %v349
    %381 = vmatprep.subr.mxu0 0.0
    %382 = vmatpush1.msra.mxu0 %v350
    %383 = vmatprep.subr.mxu0 0.0
    %384 = vmatpush1.msra.mxu0 %v351
    %385 = vmatprep.subr.mxu0 0.0
    %386 = vmatpush1.msra.mxu0 %v352
    %387 = vmatprep.subr.mxu0 0.0
    %388 = vmatpush1.msra.mxu0 %v353
    %389 = vmatprep.subr.mxu0 0.0
    %390 = vmatpush1.msra.mxu0 %v354
    %391 = vmatprep.subr.mxu0 0.0
    %392 = vmatpush1.msra.mxu0 0.0
    %393 = vmatprep.subr.mxu0 0.0
    %394 = vmatpush1.msra.mxu0 0.0
    %395 = vmatprep.subr.mxu0 0.0
    %396 = vmatpush1.msra.mxu0 0.0
    %397 = vmatprep.subr.mxu0 0.0
    %398 = vmatpush1.msra.mxu0 0.0
    %399 = vmatprep.subr.mxu0 0.0
    %400 = vmatpush1.msra.mxu0 0.0
    %401 = vmatprep.subr.mxu0 0.0
    %402 = vmatpush1.msra.mxu0 0.0
    %403 = vmatprep.subr.mxu0 0.0
    %404 = vmatpush1.msra.mxu0 0.0
    %405 = vmatprep.subr.mxu0 0.0
    %406 = vmatpush1.msra.mxu0 0.0
    %407 = vmatprep.subr.mxu0 0.0
    %408 = vmatpush1.msra.mxu0 0.0
    %409 = vmatprep.subr.mxu0 0.0
    %410 = vmatpush1.msra.mxu0 0.0
    %411 = vmatprep.subr.mxu0 0.0
    %412 = vmatpush1.msra.mxu0 0.0
    %413 = vmatprep.subr.mxu0 0.0
    %414 = vmatpush1.msra.mxu0 0.0
    %415 = vmatprep.subr.mxu0 0.0
    %416 = vmatpush1.msra.mxu0 0.0
    %417 = vmatprep.subr.mxu0 0.0
    %418 = vmatpush1.msra.mxu0 0.0
    %419 = vmatprep.subr.mxu0 0.0
    %420 = vmatpush1.msra.mxu0 0.0
    %421 = vmatprep.subr.mxu0 0.0
    %422 = vmatpush1.msra.mxu0 0.0
    %423 = vmatprep.mubr.f32.mxu0 0.0
    %424 = vmatmul.mubr.f32.gmra.mrb[0].mxu0 %v335
    %v425 = vpop.f32.mrb[0].mxu0
    %v426 = vadd.f32 %v358, %v425
    %v427 = vpop.f32.mrb[0].mxu0
    %428 = vdwg.mxu0
    %vm429 = vcmp.ge.f32.partialorder %v426, 0.0
    %v430 = vmul.f32 %v426, 0.01
    %v431 = vsel %vm429, %v426, %v430
    %v432 = vadd.f32 %v335, %v431
    %v433 = vrot.slane %v432, 4
    %v434 = vadd.f32 %v432, %v433
    %v435 = vrot.slane %v434, 2
    %v436 = vadd.f32 %v434, %v435
    %v437 = vrot.slane %v436, 1
    %v438 = vadd.f32 %v436, %v437
    %v439 = vmul.f32 %v438, 0.125
    %v440 = vmul.f32 %v432, %v432
    %v441 = vrot.slane %v440, 4
    %v442 = vadd.f32 %v440, %v441
    %v443 = vrot.slane %v442, 2
    %v444 = vadd.f32 %v442, %v443
    %v445 = vrot.slane %v444, 1
    %v446 = vadd.f32 %v444, %v445
    %v447 = vmul.f32 %v446, 0.125
    %v448 = vmul.f32 %v439, %v439
    %v449 = vsub.f32 %v447, %v448
    %v450 = vmax.f32 %v449, 0.0
    %v451 = vadd.f32 %v450, 1e-05
    %v452 = vrsqrt.pop %v451
    %v453 = vmul.f32 %v337, %v452
    %v454 = vmul.f32 %v439, %v453
    %v456 = vrot.slane %v454, 7
    %v458 = vsub.f32 %v337, %v456
    %v459 = vlaneseq
    %v460 = vshrl.u32 %v459, 7
    %v461 = vsub.s32 1, %v460
    %v462 = vrot.slane %v453, %v461
    %v463 = vmul.f32 %v432, %v462
    %v464 = vlaneseq
    %v465 = vshrl.u32 %v464, 7
    %v466 = vsub.s32 2, %v465
    %v467 = vrot.slane %v458, %v466
    %v468 = vadd.f32 %v463, %v467
    %469 = vst [vmem:[#allocation2] sm:$0xff] %v468
    // Predicated region
    $region46: #{tpu_custom_call.1} parent=1 // pred_check
      %p470 = pneg %p68
    $region47: #{tpu_custom_call.1} parent=1 // pred_check_branch
      %472 = sbr.rel (%p470) target = $region49
    $region48: #{tpu_custom_call.1} parent=1 // pred_region
      %v473 = vld [vmem:[#allocation2] sm:$0xff]
      %v474 = vld [vmem:[#allocation8] sm:$0xff]
      %v475 = vld [vmem:[#allocation8 + $0x8] sm:$0xff]
      %v476 = vld [vmem:[#allocation8 + $0x10] sm:$0xff]
      %v477 = vld [vmem:[#allocation8 + $0x18] sm:$0xff]
      %v478 = vld [vmem:[#allocation8 + $0x20] sm:$0xff]
      %v479 = vld [vmem:[#allocation8 + $0x28] sm:$0xff]
      %v480 = vld [vmem:[#allocation8 + $0x30] sm:$0xff]
      %v481 = vld [vmem:[#allocation8 + $0x38] sm:$0xff]
      %v482 = vld [vmem:[#allocation8 + $0x40] sm:$0xff]
      %v483 = vld [vmem:[#allocation8 + $0x48] sm:$0xff]
      %v484 = vld [vmem:[#allocation8 + $0x50] sm:$0xff]
      %v485 = vld [vmem:[#allocation8 + $0x58] sm:$0xff]
      %v486 = vld [vmem:[#allocation8 + $0x60] sm:$0xff]
      %v487 = vld [vmem:[#allocation8 + $0x68] sm:$0xff]
      %v488 = vld [vmem:[#allocation8 + $0x70] sm:$0xff]
      %v489 = vld [vmem:[#allocation8 + $0x78] sm:$0xff]
      %v490 = vld [vmem:[%s6] sm:$0x1]
      %v492 = vlaneseq
      %v493 = vshrl.u32 %v492, 7
      %v494 = vsub.s32 0, %v493
      %v495 = vrot.slane %v490, %v494
      %497 = vmatprep.subr.mxu0 0.0
      %498 = vmatpush1.msra.mxu0 %v474
      %499 = vmatprep.subr.mxu0 0.0
      %500 = vmatpush1.msra.mxu0 %v475
      %501 = vmatprep.subr.mxu0 0.0
      %502 = vmatpush1.msra.mxu0 %v476
      %503 = vmatprep.subr.mxu0 0.0
      %504 = vmatpush1.msra.mxu0 %v477
      %505 = vmatprep.subr.mxu0 0.0
      %506 = vmatpush1.msra.mxu0 %v478
      %507 = vmatprep.subr.mxu0 0.0
      %508 = vmatpush1.msra.mxu0 %v479
      %509 = vmatprep.subr.mxu0 0.0
      %510 = vmatpush1.msra.mxu0 %v480
      %511 = vmatprep.subr.mxu0 0.0
      %512 = vmatpush1.msra.mxu0 %v481
      %513 = vmatprep.subr.mxu0 0.0
      %514 = vmatpush1.msra.mxu0 %v482
      %515 = vmatprep.subr.mxu0 0.0
      %516 = vmatpush1.msra.mxu0 %v483
      %517 = vmatprep.subr.mxu0 0.0
      %518 = vmatpush1.msra.mxu0 %v484
      %519 = vmatprep.subr.mxu0 0.0
      %520 = vmatpush1.msra.mxu0 %v485
      %521 = vmatprep.subr.mxu0 0.0
      %522 = vmatpush1.msra.mxu0 %v486
      %523 = vmatprep.subr.mxu0 0.0
      %524 = vmatpush1.msra.mxu0 %v487
      %525 = vmatprep.subr.mxu0 0.0
      %526 = vmatpush1.msra.mxu0 %v488
      %527 = vmatprep.subr.mxu0 0.0
      %528 = vmatpush1.msra.mxu0 %v489
      %529 = vmatprep.subr.mxu0 0.0
      %530 = vmatpush1.msra.mxu0 0.0
      %531 = vmatprep.subr.mxu0 0.0
      %532 = vmatpush1.msra.mxu0 0.0
      %533 = vmatprep.subr.mxu0 0.0
      %534 = vmatpush1.msra.mxu0 0.0
      %535 = vmatprep.subr.mxu0 0.0
      %536 = vmatpush1.msra.mxu0 0.0
      %537 = vmatprep.subr.mxu0 0.0
      %538 = vmatpush1.msra.mxu0 0.0
      %539 = vmatprep.subr.mxu0 0.0
      %540 = vmatpush1.msra.mxu0 0.0
      %541 = vmatprep.subr.mxu0 0.0
      %542 = vmatpush1.msra.mxu0 0.0
      %543 = vmatprep.subr.mxu0 0.0
      %544 = vmatpush1.msra.mxu0 0.0
      %545 = vmatprep.subr.mxu0 0.0
      %546 = vmatpush1.msra.mxu0 0.0
      %547 = vmatprep.subr.mxu0 0.0
      %548 = vmatpush1.msra.mxu0 0.0
      %549 = vmatprep.subr.mxu0 0.0
      %550 = vmatpush1.msra.mxu0 0.0
      %551 = vmatprep.subr.mxu0 0.0
      %552 = vmatpush1.msra.mxu0 0.0
      %553 = vmatprep.subr.mxu0 0.0
      %554 = vmatpush1.msra.mxu0 0.0
      %555 = vmatprep.subr.mxu0 0.0
      %556 = vmatpush1.msra.mxu0 0.0
      %557 = vmatprep.subr.mxu0 0.0
      %558 = vmatpush1.msra.mxu0 0.0
      %559 = vmatprep.subr.mxu0 0.0
      %560 = vmatpush1.msra.mxu0 0.0
      %561 = vmatprep.mubr.f32.mxu0 0.0
      %562 = vmatmul.mubr.f32.gmra.mrb[0].mxu0 %v473
      %v563 = vpop.f32.mrb[0].mxu0
      %v564 = vadd.f32 %v495, %v563
      %v565 = vpop.f32.mrb[0].mxu0
      %566 = vdwg.mxu0
      %567 = vst [vmem:[#allocation9] sm:$0xff] %v564
    $region49: #{tpu_custom_call.1} parent=1 // pred_fallthru
      _
    // Predicated region
    $region50: #{tpu_custom_call.1} parent=1 // pred_check
      _
    $region51: #{tpu_custom_call.1} parent=1 // pred_check_branch
      %569 = sbr.rel (0) target = $region53
    $region52: #{tpu_custom_call.1} parent=1 // pred_region
      %s571 = ssub.s32 128, 128
      %572 = vsyncadd [#allocation5], %s571
      %s574 = sshll.u32 [#allocation9], 4
      %s575 = int_to_ptr.vmem [resolvable:$true] %s574
      %577 = dma.vmem_to_hbm [thread:$0]  %s575, 128, %s7, [#allocation5]
    $region53: #{tpu_custom_call.1} parent=1 // pred_fallthru
      _
    // Predicated region
    $region54: #{tpu_custom_call.1} parent=1 // pred_check
      _
    $region55: #{tpu_custom_call.1} parent=1 // pred_check_branch
      %579 = sbr.rel (0) target = $region57
    $region56: #{tpu_custom_call.1} parent=1 // pred_region
      %580 = dma.done [#allocation5], 128
    $region57: #{tpu_custom_call.1} parent=1 // pred_fallthru
      _
    %581 = vsyncpa [#allocation4], 1
    %582 = vsyncpa [#allocation7], 1
    %583 = vsyncpa [#allocation5], 1

</llo_original>
